<compile_context>
chip_gen: v7x
topology: tpu7x:2x2x1
jax: 0.10.0
libtpu: 0.0.40
codegen_flags: <defaults>
</compile_context>

<pallas_src>
import numpy as np
import jax
import jax.numpy as jnp
from jax.experimental import pallas as pl
from jax.experimental.pallas import tpu as pltpu


def _round_up(x: int, m: int) -> int:
    return ((x + m - 1) // m) * m


def aggregation_forward(x, w1, b1, w2, b2, *, dim=0, tile_n=1024):
    """Pallas TPU forward for Aggregation.

    x : (N, D) float32 instances.
    w1: (D, A), b1: (A,)   -- first attention Linear
    w2: (A, 1), b2: (1,)   -- second attention Linear (scalar gate)
    Returns mean(x * gate, axis=0), shape (D,), float32.
    """
    if dim != 0:
        # TODO(synk): only the module default dim=0 (mean over instances) is implemented.
        raise NotImplementedError("only dim=0 is supported")

    n, d = x.shape
    a = w1.shape[1]

    # Row tile: multiple of 8 (sublane), capped at the (rounded) instance count.
    tile = min(tile_n, _round_up(n, 8))
    tile = _round_up(tile, 8)
    grid = (pl.cdiv(n, tile),)
    needs_mask = (n % tile) != 0

    x_f = x.astype(jnp.float32)
    w1_f = w1.astype(jnp.float32)                                # (D, A)
    b1_f = b1.astype(jnp.float32).reshape((1, a))                # (1, A)
    w2_f = w2.astype(jnp.float32).reshape((1, a))                # (1, A)  (column -> row)
    b2_s = jnp.asarray(b2, jnp.float32).reshape((1,))            # SMEM scalar

    inv_n = 1.0 / float(n)  # true N; masked-out rows contribute zero

    def kernel(x_ref, w1_ref, b1_ref, w2_ref, b2_ref, out_ref):
        i = pl.program_id(0)

        @pl.when(i == 0)
        def _init():
            out_ref[...] = jnp.zeros_like(out_ref)

        xt = x_ref[...]                                          # (tile, d)
        # attention_layer: Linear(D->A) + tanh
        h = jnp.dot(xt, w1_ref[...], preferred_element_type=jnp.float32)
        h = jnp.tanh(h + b1_ref[...])                            # (tile, a)
        # Linear(A->1): VPU multiply + lane reduction (avoids a 1-wide MXU matmul)
        gate = jnp.sum(h * w2_ref[...], axis=-1, keepdims=True) + b2_ref[0]  # (tile, 1)
        gated = xt * gate                                        # attention_map tile

        if needs_mask:
            # Zero out rows beyond N in the (clipped) last tile.  Mask the
            # product (not the gate) so stale-VMEM NaN/Inf cannot leak in.
            row = jax.lax.broadcasted_iota(jnp.int32, (tile, 1), 0)
            valid = (row + i * tile) < n
            gated = jnp.where(valid, gated, 0.0)

        # Partial mean-reduction over the instance axis, carried in the
        # resident output block.
        out_ref[...] += jnp.sum(gated, axis=0, keepdims=True)

        @pl.when(i == pl.num_programs(0) - 1)
        def _finalize():
            out_ref[...] = out_ref[...] * inv_n

    n_tiles = grid[0]
    cost = pl.CostEstimate(
        flops=2 * n_tiles * tile * d * a + 6 * n_tiles * tile * (a + d),
        transcendentals=n_tiles * tile * a,
        bytes_accessed=4 * (n * d + d * a + 3 * a + 1 + d),
    )

    out = pl.pallas_call(
        kernel,
        out_shape=jax.ShapeDtypeStruct((1, d), jnp.float32),
        grid_spec=pltpu.PrefetchScalarGridSpec(
            num_scalar_prefetch=0,
            grid=grid,
            in_specs=[
                pl.BlockSpec((tile, d), lambda i: (i, 0)),          # x: streamed row tiles
                pl.BlockSpec((d, a), lambda i: (0, 0)),             # W1: VMEM-resident
                pl.BlockSpec((1, a), lambda i: (0, 0)),             # b1: VMEM-resident
                pl.BlockSpec((1, a), lambda i: (0, 0)),             # w2 row: VMEM-resident
                pl.BlockSpec(memory_space=pltpu.MemorySpace.SMEM),  # b2 scalar in SMEM
            ],
            out_specs=pl.BlockSpec((1, d), lambda i: (0, 0)),
        ),
        compiler_params=pltpu.CompilerParams(
            # the single grid axis is the N-reduction (carried accumulator)
            dimension_semantics=("arbitrary",),
        ),
        cost_estimate=cost,
    )(x_f, w1_f, b1_f, w2_f, b2_s)

    return out[0]


def reference_forward(x, w1, b1, w2, b2, dim=0):
    """Pure-JAX reference matching the PyTorch module."""
    gate = jnp.tanh(x @ w1 + b1) @ w2 + b2      # (N, 1)
    return jnp.mean(x * gate, axis=dim)


if __name__ == "__main__":
    # Shapes implied by the module defaults: linear_nodes=15, attention_nodes=15.
    # N chosen so that with tile_n=256 the grid has 3 steps and a partial
    # (masked) last tile -> exercises the accumulation + masking paths.
    N, D, A = 600, 15, 15

    key = jax.random.PRNGKey(0)
    kx, k1, kb1, k2, kb2 = jax.random.split(key, 5)

    x = jax.random.normal(kx, (N, D), dtype=jnp.float32)
    w1 = jax.random.normal(k1, (D, A), dtype=jnp.float32) * 0.1
    b1 = jax.random.normal(kb1, (A,), dtype=jnp.float32) * 0.1
    w2 = jax.random.normal(k2, (A, 1), dtype=jnp.float32) * 0.1
    b2 = jax.random.normal(kb2, (1,), dtype=jnp.float32) * 0.1

    out = aggregation_forward(x, w1, b1, w2, b2, tile_n=256)
    out = jax.block_until_ready(out)
    assert out.shape == (D,)

    ref = reference_forward(x, w1, b1, w2, b2)
    np.testing.assert_allclose(np.asarray(out), np.asarray(ref), rtol=1e-3, atol=1e-4)

    # Also check the single-tile (no-mask) path.
    out2 = jax.block_until_ready(aggregation_forward(x, w1, b1, w2, b2, tile_n=1024))
    np.testing.assert_allclose(np.asarray(out2), np.asarray(ref), rtol=1e-3, atol=1e-4)

    print("KERNEL_OK")
</pallas_src>

<mosaic_0001>
module attributes {stable_mosaic.version = 11 : i64} {
  func.func @kernel(%arg0: i32, %arg1: memref<256x15xf32, #tpu.memory_space<vmem>>, %arg2: memref<15x15xf32, #tpu.memory_space<vmem>>, %arg3: memref<1x15xf32, #tpu.memory_space<vmem>>, %arg4: memref<1x15xf32, #tpu.memory_space<vmem>>, %arg5: memref<1xf32, #tpu.memory_space<smem>>, %arg6: memref<1x15xf32, #tpu.memory_space<vmem>>) attributes {dimension_semantics = [#tpu.dimension_semantics<arbitrary>], iteration_bounds = array<i64: 3>, scalar_prefetch = 0 : i64, scratch_operands = 0 : i64, tpu.core_type = #tpu.core_type<tc>, window_params = [{transform_indices = @transform_0, window_bounds = array<i64: 256, 15>}, {pipeline_mode = #tpu.pipeline_mode<synchronous>, transform_indices = @transform_1, window_bounds = array<i64: 15, 15>}, {pipeline_mode = #tpu.pipeline_mode<synchronous>, transform_indices = @transform_2, window_bounds = array<i64: 1, 15>}, {pipeline_mode = #tpu.pipeline_mode<synchronous>, transform_indices = @transform_3, window_bounds = array<i64: 1, 15>}, {transform_indices = @transform_4, window_bounds = array<i64: 1>}, {pipeline_mode = #tpu.pipeline_mode<synchronous>, transform_indices = @transform_5, window_bounds = array<i64: 1, 15>}]} {
    %c0_i32 = arith.constant 0 : i32
    %0 = arith.cmpi eq, %arg0, %c0_i32 : i32
    %1 = arith.extui %0 : i1 to i32
    %c0_i32_0 = arith.constant 0 : i32
    %2 = arith.cmpi ne, %1, %c0_i32_0 : i32
    scf.if %2 {
      %cst_17 = arith.constant 0.000000e+00 : f32
      %38 = vector.broadcast %cst_17 : f32 to vector<1x15xf32>
      %c0_18 = arith.constant 0 : index
      %c0_19 = arith.constant 0 : index
      %39 = vector.load %arg6[%c0_18, %c0_19] : memref<1x15xf32, #tpu.memory_space<vmem>>, vector<1x15xf32>
      tpu.vector_store %arg6[%c0_18, %c0_19], %38 {strides = array<i32>} : memref<1x15xf32, #tpu.memory_space<vmem>>, vector<1x15xf32>,
    } else {
    }
    %c0 = arith.constant 0 : index
    %c0_1 = arith.constant 0 : index
    %3 = vector.load %arg1[%c0, %c0_1] : memref<256x15xf32, #tpu.memory_space<vmem>>, vector<256x15xf32>
    %c0_2 = arith.constant 0 : index
    %c0_3 = arith.constant 0 : index
    %4 = vector.load %arg2[%c0_2, %c0_3] : memref<15x15xf32, #tpu.memory_space<vmem>>, vector<15x15xf32>
    %cst = arith.constant dense<0.000000e+00> : vector<256x15xf32>
    %5 = tpu.matmul %3, %4, %cst {dimension_numbers = #tpu.dot_dimension_numbers<[1], [0], [0], [1], [0, 0, 1, 1], [], []>} : vector<256x15xf32>, vector<15x15xf32>, vector<256x15xf32> -> vector<256x15xf32>
    %c0_4 = arith.constant 0 : index
    %c0_5 = arith.constant 0 : index
    %6 = vector.load %arg3[%c0_4, %c0_5] : memref<1x15xf32, #tpu.memory_space<vmem>>, vector<1x15xf32>
    %7 = vector.broadcast %6 : vector<1x15xf32> to vector<256x15xf32>
    %8 = arith.addf %5, %7 : vector<256x15xf32>
    %9 = math.tanh %8 : vector<256x15xf32>
    %c0_6 = arith.constant 0 : index
    %c0_7 = arith.constant 0 : index
    %10 = vector.load %arg4[%c0_6, %c0_7] : memref<1x15xf32, #tpu.memory_space<vmem>>, vector<1x15xf32>
    %11 = vector.broadcast %10 : vector<1x15xf32> to vector<256x15xf32>
    %12 = arith.mulf %9, %11 : vector<256x15xf32>
    %cst_8 = arith.constant dense<0.000000e+00> : vector<256xf32>
    %13 = vector.multi_reduction <add>, %12, %cst_8 [1] : vector<256x15xf32> to vector<256xf32>
    %14 = vector.shape_cast %13 : vector<256xf32> to vector<256x1xf32>
    %c0_9 = arith.constant 0 : index
    %15 = memref.load %arg5[%c0_9] : memref<1xf32, #tpu.memory_space<smem>>
    %16 = vector.broadcast %15 : f32 to vector<256x1xf32>
    %17 = arith.addf %14, %16 : vector<256x1xf32>
    %18 = vector.broadcast %17 : vector<256x1xf32> to vector<256x15xf32>
    %19 = arith.mulf %3, %18 : vector<256x15xf32>
    %20 = tpu.iota {dimensions = array<i32: 0>} : vector<256x1xi32>
    %c256_i32 = arith.constant 256 : i32
    %21 = arith.muli %arg0, %c256_i32 : i32
    %22 = vector.broadcast %21 : i32 to vector<256x1xi32>
    %23 = arith.addi %20, %22 : vector<256x1xi32>
    %c600_i32 = arith.constant 600 : i32
    %24 = vector.broadcast %c600_i32 : i32 to vector<256x1xi32>
    %25 = arith.cmpi slt, %23, %24 : vector<256x1xi32>
    %cst_10 = arith.constant 0.000000e+00 : f32
    %26 = vector.shape_cast %25 : vector<256x1xi1> to vector<256x1xi1>
    %27 = vector.broadcast %26 : vector<256x1xi1> to vector<256x15xi1>
    %28 = vector.broadcast %cst_10 : f32 to vector<256x15xf32>
    %29 = arith.select %27, %19, %28 : vector<256x15xi1>, vector<256x15xf32>
    %c0_11 = arith.constant 0 : index
    %c0_12 = arith.constant 0 : index
    %30 = vector.load %arg6[%c0_11, %c0_12] : memref<1x15xf32, #tpu.memory_space<vmem>>, vector<1x15xf32>
    %cst_13 = arith.constant dense<0.000000e+00> : vector<15xf32>
    %31 = vector.multi_reduction <add>, %29, %cst_13 [0] : vector<256x15xf32> to vector<15xf32>
    %32 = vector.shape_cast %31 : vector<15xf32> to vector<1x15xf32>
    %33 = arith.addf %30, %32 : vector<1x15xf32>
    %c0_14 = arith.constant 0 : index
    %c0_15 = arith.constant 0 : index
    %34 = vector.load %arg6[%c0_14, %c0_15] : memref<1x15xf32, #tpu.memory_space<vmem>>, vector<1x15xf32>
    tpu.vector_store %arg6[%c0_14, %c0_15], %33 {strides = array<i32>} : memref<1x15xf32, #tpu.memory_space<vmem>>, vector<1x15xf32>,
    %c2_i32 = arith.constant 2 : i32
    %35 = arith.cmpi eq, %arg0, %c2_i32 : i32
    %36 = arith.extui %35 : i1 to i32
    %c0_i32_16 = arith.constant 0 : i32
    %37 = arith.cmpi ne, %36, %c0_i32_16 : i32
    scf.if %37 {
      %c0_17 = arith.constant 0 : index
      %c0_18 = arith.constant 0 : index
      %38 = vector.load %arg6[%c0_17, %c0_18] : memref<1x15xf32, #tpu.memory_space<vmem>>, vector<1x15xf32>
      %cst_19 = arith.constant 0.00166666671 : f32
      %39 = vector.broadcast %cst_19 : f32 to vector<1x15xf32>
      %40 = arith.mulf %38, %39 : vector<1x15xf32>
      %c0_20 = arith.constant 0 : index
      %c0_21 = arith.constant 0 : index
      %41 = vector.load %arg6[%c0_20, %c0_21] : memref<1x15xf32, #tpu.memory_space<vmem>>, vector<1x15xf32>
      tpu.vector_store %arg6[%c0_20, %c0_21], %40 {strides = array<i32>} : memref<1x15xf32, #tpu.memory_space<vmem>>, vector<1x15xf32>,
    } else {
    }
    return
  }
  func.func @transform_0(%arg0: i32) -> (i32, i32) {
    %c0_i32 = arith.constant 0 : i32
    %c0_i32_0 = arith.constant 0 : i32
    return %arg0, %c0_i32 : i32, i32
  }
  func.func @transform_1(%arg0: i32) -> (i32, i32) {
    %c0_i32 = arith.constant 0 : i32
    %c0_i32_0 = arith.constant 0 : i32
    %c0_i32_1 = arith.constant 0 : i32
    return %c0_i32, %c0_i32_0 : i32, i32
  }
  func.func @transform_2(%arg0: i32) -> (i32, i32) {
    %c0_i32 = arith.constant 0 : i32
    %c0_i32_0 = arith.constant 0 : i32
    %c0_i32_1 = arith.constant 0 : i32
    return %c0_i32, %c0_i32_0 : i32, i32
  }
  func.func @transform_3(%arg0: i32) -> (i32, i32) {
    %c0_i32 = arith.constant 0 : i32
    %c0_i32_0 = arith.constant 0 : i32
    %c0_i32_1 = arith.constant 0 : i32
    return %c0_i32, %c0_i32_0 : i32, i32
  }
  func.func @transform_4(%arg0: i32) -> i32 {
    %c0_i32 = arith.constant 0 : i32
    %c0_i32_0 = arith.constant 0 : i32
    return %c0_i32 : i32
  }
  func.func @transform_5(%arg0: i32) -> (i32, i32) {
    %c0_i32 = arith.constant 0 : i32
    %c0_i32_0 = arith.constant 0 : i32
    %c0_i32_1 = arith.constant 0 : i32
    return %c0_i32, %c0_i32_0 : i32, i32
  }
}

</mosaic_0001>

<llo_original>
// kernel: tpu_custom_call.1
$region0: #{tpu_custom_call.1}
  #allocation0 [shape = 'u32[]', space=smem, size = 0x4, offset = 0x4, fixed_abs, tag = 'smem constant byte address 0x4 - core index']
  #allocation1 [shape = 'u32[144,128]{1,0:T(1,128)}', space=vmem, size = 0x12000, scoped, tag = 'internal scratch']
  #allocation2 [shape = 'f32[1]{0:T(128)S(6)}', space=smem, size = 0x200, scoped, tag = 'scoped memory for tpu_custom_call.1']
  %s0 = inlined_call_operand.vmem [shape: f32[600,15], index: 0, kind: input, shape index: {}]
  %s1 = inlined_call_operand.vmem [shape: f32[15,15], index: 1, kind: input, shape index: {}]
  %s2 = inlined_call_operand.vmem [shape: f32[1,15], index: 2, kind: input, shape index: {}]
  %s3 = inlined_call_operand.vmem [shape: f32[1,15], index: 3, kind: input, shape index: {}]
  %s4 = inlined_call_operand.<no memory space> [shape: f32[1], index: 4, kind: input, shape index: {}]
  %s5 = inlined_call_operand.hbm [shape: f32[1,15], index: 5, kind: output, shape index: {}]
  %s6 = sld [smem:[#allocation0]]
  $region61: #{tpu_custom_call.1} parent=0
    _
  %s8 = ssub.s32 1, %s6
  %s9 = scalar_select 0, %s8, %s6
  %10 = sst [smem:[#allocation2]] %s4
  $region1: #{tpu_custom_call.1} parent=0
    #allocation3 [shape = 'u8[512]{0}', space=vmem, size = 0x400, scoped, tag = 'output window, operand 0, single buffered']
    #allocation4 [shape = 's32[2]{0}', space=sflag, size = 0x8, scoped, tag = 'scoped memory for tpu_custom_call.1']
    %11 = vsyncpa [#allocation4], 0
    loop: start=0, step=1, limit=5
    $region2: #{tpu_custom_call.1} parent=1 // loop_pre_header
      _
    $region3: #{tpu_custom_call.1} parent=1 // loop_header
      %s13 = sphi 0, %s17
      %p14 = scmp.ge.s32.totalorder %s13, 5
      %s23 = sphi 0, %s25
      %s26 = sphi 0, %s23
      %s27 = sphi 0, %s26
      %s43 = sphi 0, %s27
      %s47 = sphi 0, %s47
      %s49 = sphi 0, %s47
      %s50 = sphi 0, %s49
      %s64 = sphi 0, %s50
      %s68 = sphi 0, %s68
      %s70 = sphi 0, %s68
      %s71 = sphi 0, %s70
      %s85 = sphi 0, %s71
      %s89 = sphi 0, %s89
      %s91 = sphi 0, %s89
      %s92 = sphi 0, %s91
      %s106 = sphi 0, %s92
      %s110 = sphi 0, %s110
      %s112 = sphi 0, %s110
      %s113 = sphi 0, %s112
      %s127 = sphi 0, %s113
      %s131 = sphi 0, %s131
      %s133 = sphi 0, %s131
      %s134 = sphi 0, %s133
      %s148 = sphi 0, %s134
    $region4: #{tpu_custom_call.1} parent=1 // loop_header_branch
      %16 = sbr.rel (%p14) target = $region8
    $region5: #{tpu_custom_call.1} parent=1 // loop_body
      %s18 = ssub.s32 %s13, 1
      %s19 = ssub.s32 %s13, 2
      %s20 = sadd.s32 %s13, 1
      %s21 = ssub.s32 %s13, %s20
      %p22 = scmp.eq.s32.totalorder %s21, 0
      %s24 = sadd.s32 %s23, 1
      %s25 = scalar_select %p22, %s23, %s24
      %p28 = pneg %p22
      %p29 = scmp.eq.s32.totalorder %s13, 2
      %p30 = por %p28, %p29
      %p31 = scmp.ne.s32.totalorder %s23, %s26
      %p32 = scmp.eq.s32.totalorder %s13, 0
      %p33 = por %p31, %p32
      %p34 = scmp.ne.s32.totalorder %s23, %s26
      %p35 = scmp.eq.s32.totalorder %s18, 2
      %p36 = por %p34, %p35
      %p37 = scmp.ne.s32.totalorder %s26, %s27
      %p38 = scmp.eq.s32.totalorder %s18, 0
      %p39 = por %p37, %p38
      %p40 = scmp.ne.s32.totalorder %s26, %s27
      %p41 = scmp.eq.s32.totalorder %s19, 2
      %p42 = por %p40, %p41
      %p44 = scmp.ne.s32.totalorder %s27, %s43
      %p45 = scmp.eq.s32.totalorder %s19, 0
      %p46 = por %p44, %p45
      %s48 = sadd.s32 %s47, 1
      %p51 = scmp.eq.s32.totalorder %s13, 2
      %p52 = scmp.ne.s32.totalorder %s47, %s49
      %p53 = scmp.eq.s32.totalorder %s13, 0
      %p54 = por %p52, %p53
      %p55 = scmp.ne.s32.totalorder %s47, %s49
      %p56 = scmp.eq.s32.totalorder %s18, 2
      %p57 = por %p55, %p56
      %p58 = scmp.ne.s32.totalorder %s49, %s50
      %p59 = scmp.eq.s32.totalorder %s18, 0
      %p60 = por %p58, %p59
      %p61 = scmp.ne.s32.totalorder %s49, %s50
      %p62 = scmp.eq.s32.totalorder %s19, 2
      %p63 = por %p61, %p62
      %p65 = scmp.ne.s32.totalorder %s50, %s64
      %p66 = scmp.eq.s32.totalorder %s19, 0
      %p67 = por %p65, %p66
      %s69 = sadd.s32 %s68, 1
      %p72 = scmp.eq.s32.totalorder %s13, 2
      %p73 = scmp.ne.s32.totalorder %s68, %s70
      %p74 = scmp.eq.s32.totalorder %s13, 0
      %p75 = por %p73, %p74
      %p76 = scmp.ne.s32.totalorder %s68, %s70
      %p77 = scmp.eq.s32.totalorder %s18, 2
      %p78 = por %p76, %p77
      %p79 = scmp.ne.s32.totalorder %s70, %s71
      %p80 = scmp.eq.s32.totalorder %s18, 0
      %p81 = por %p79, %p80
      %p82 = scmp.ne.s32.totalorder %s70, %s71
      %p83 = scmp.eq.s32.totalorder %s19, 2
      %p84 = por %p82, %p83
      %p86 = scmp.ne.s32.totalorder %s71, %s85
      %p87 = scmp.eq.s32.totalorder %s19, 0
      %p88 = por %p86, %p87
      %s90 = sadd.s32 %s89, 1
      %p93 = scmp.eq.s32.totalorder %s13, 2
      %p94 = scmp.ne.s32.totalorder %s89, %s91
      %p95 = scmp.eq.s32.totalorder %s13, 0
      %p96 = por %p94, %p95
      %p97 = scmp.ne.s32.totalorder %s89, %s91
      %p98 = scmp.eq.s32.totalorder %s18, 2
      %p99 = por %p97, %p98
      %p100 = scmp.ne.s32.totalorder %s91, %s92
      %p101 = scmp.eq.s32.totalorder %s18, 0
      %p102 = por %p100, %p101
      %p103 = scmp.ne.s32.totalorder %s91, %s92
      %p104 = scmp.eq.s32.totalorder %s19, 2
      %p105 = por %p103, %p104
      %p107 = scmp.ne.s32.totalorder %s92, %s106
      %p108 = scmp.eq.s32.totalorder %s19, 0
      %p109 = por %p107, %p108
      %s111 = sadd.s32 %s110, 1
      %p114 = scmp.eq.s32.totalorder %s13, 2
      %p115 = scmp.ne.s32.totalorder %s110, %s112
      %p116 = scmp.eq.s32.totalorder %s13, 0
      %p117 = por %p115, %p116
      %p118 = scmp.ne.s32.totalorder %s110, %s112
      %p119 = scmp.eq.s32.totalorder %s18, 2
      %p120 = por %p118, %p119
      %p121 = scmp.ne.s32.totalorder %s112, %s113
      %p122 = scmp.eq.s32.totalorder %s18, 0
      %p123 = por %p121, %p122
      %p124 = scmp.ne.s32.totalorder %s112, %s113
      %p125 = scmp.eq.s32.totalorder %s19, 2
      %p126 = por %p124, %p125
      %p128 = scmp.ne.s32.totalorder %s113, %s127
      %p129 = scmp.eq.s32.totalorder %s19, 0
      %p130 = por %p128, %p129
      %s132 = sadd.s32 %s131, 1
      %p135 = scmp.eq.s32.totalorder %s13, 2
      %p136 = scmp.ne.s32.totalorder %s131, %s133
      %p137 = scmp.eq.s32.totalorder %s13, 0
      %p138 = por %p136, %p137
      %p139 = scmp.ne.s32.totalorder %s131, %s133
      %p140 = scmp.eq.s32.totalorder %s18, 2
      %p141 = por %p139, %p140
      %p142 = scmp.ne.s32.totalorder %s133, %s134
      %p143 = scmp.eq.s32.totalorder %s18, 0
      %p144 = por %p142, %p143
      %p145 = scmp.ne.s32.totalorder %s133, %s134
      %p146 = scmp.eq.s32.totalorder %s19, 2
      %p147 = por %p145, %p146
      %p149 = scmp.ne.s32.totalorder %s134, %s148
      %p150 = scmp.eq.s32.totalorder %s19, 0
      %p151 = por %p149, %p150
      %p152 = scmp.le.s32.totalorder 1, %s13
      %p153 = scmp.lt.s32.totalorder %s13, 4
      %p154 = pnand %p152, %p153
      %p155 = pneg %p154
      // Predicated region
      $region9: #{tpu_custom_call.1} parent=5 // pred_check
        _
      $region10: #{tpu_custom_call.1} parent=5 // pred_check_branch
        %157 = sbr.rel (%p154) target = $region12
      $region11: #{tpu_custom_call.1} parent=5 // pred_region
        %s158 = ssub.s32 %s13, 1
        // Predicated region
        $region13: #{tpu_custom_call.1} parent=11 // pred_check
          %p159 = pneg %p60
        $region14: #{tpu_custom_call.1} parent=11 // pred_check_branch
          %161 = sbr.rel (%p159) target = $region16
        $region15: #{tpu_custom_call.1} parent=11 // pred_region
          _
        $region16: #{tpu_custom_call.1} parent=11 // pred_fallthru
          _
        // Predicated region
        $region17: #{tpu_custom_call.1} parent=11 // pred_check
          %p162 = pneg %p81
        $region18: #{tpu_custom_call.1} parent=11 // pred_check_branch
          %164 = sbr.rel (%p162) target = $region20
        $region19: #{tpu_custom_call.1} parent=11 // pred_region
          _
        $region20: #{tpu_custom_call.1} parent=11 // pred_fallthru
          _
        // Predicated region
        $region21: #{tpu_custom_call.1} parent=11 // pred_check
          %p165 = pneg %p102
        $region22: #{tpu_custom_call.1} parent=11 // pred_check_branch
          %167 = sbr.rel (%p165) target = $region24
        $region23: #{tpu_custom_call.1} parent=11 // pred_region
          _
        $region24: #{tpu_custom_call.1} parent=11 // pred_fallthru
          _
        // Predicated region
        $region25: #{tpu_custom_call.1} parent=11 // pred_check
          %p168 = pneg %p123
        $region26: #{tpu_custom_call.1} parent=11 // pred_check_branch
          %170 = sbr.rel (%p168) target = $region28
        $region27: #{tpu_custom_call.1} parent=11 // pred_region
          _
        $region28: #{tpu_custom_call.1} parent=11 // pred_fallthru
          _
      $region12: #{tpu_custom_call.1} parent=5 // pred_fallthru
        _
      %p171 = scmp.lt.s32.totalorder %s13, 3
      // Predicated region
      $region29: #{tpu_custom_call.1} parent=5 // pred_check
        %p172 = pneg %p171
      $region30: #{tpu_custom_call.1} parent=5 // pred_check_branch
        %174 = sbr.rel (%p172) target = $region32
      $region31: #{tpu_custom_call.1} parent=5 // pred_region
        // Predicated region
        $region33: #{tpu_custom_call.1} parent=31 // pred_check
          %p175 = pneg %p33
        $region34: #{tpu_custom_call.1} parent=31 // pred_check_branch
          %177 = sbr.rel (%p175) target = $region36
        $region35: #{tpu_custom_call.1} parent=31 // pred_region
          %s178 = smul.u32 32, %s13
          %s179 = ssub.s32 75, %s178
          %p180 = scmp.lt.s32.totalorder %s179, 32
          %s181 = scalar_select %p180, %s179, 32
          %s182 = smul.u32 128, %s181
          %p183 = scmp.lt.s32.totalorder %s178, 74
          %s184 = scalar_select %p183, %s178, 74
          %s185 = smul.addr %s184, 8
          %s186 = scalar_lea.vmem %s0, %s185
          %s187 = smul.u32 32, %s13
          %s188 = ssub.s32 75, %s187
          %p189 = scmp.lt.s32.totalorder %s188, 32
          %s190 = scalar_select %p189, %s188, 32
          %s191 = smul.u32 128, %s190
        $region36: #{tpu_custom_call.1} parent=31 // pred_fallthru
          _
      $region32: #{tpu_custom_call.1} parent=5 // pred_fallthru
        _
      %p192 = scmp.le.s32.totalorder 1, %s13
      %p193 = scmp.lt.s32.totalorder %s13, 4
      %p194 = pnand %p192, %p193
      %p195 = pneg %p194
      // Predicated region
      $region37: #{tpu_custom_call.1} parent=5 // pred_check
        _
      $region38: #{tpu_custom_call.1} parent=5 // pred_check_branch
        %197 = sbr.rel (%p194) target = $region40
      $region39: #{tpu_custom_call.1} parent=5 // pred_region
        %s198 = ssub.s32 %s13, 1
        %s199 = smul.u32 32, %s18
        %s200 = ssub.s32 75, %s199
        %p201 = scmp.lt.s32.totalorder %s200, 32
        %s202 = scalar_select %p201, %s200, 32
        %s203 = smul.u32 128, %s202
        %p204 = scmp.lt.s32.totalorder %s199, 74
        %s205 = scalar_select %p204, %s199, 74
        %s206 = smul.addr %s205, 8
        %s207 = scalar_lea.vmem %s0, %s206
        %p208 = pneg %p39
        %p209 = pneg %p36
        %p210 = pneg %p60
        %p211 = pneg %p57
        %p212 = pneg %p81
        %p213 = pneg %p78
        %p214 = pneg %p102
        %p215 = pneg %p99
        %p216 = pneg %p123
        %p217 = pneg %p120
        %p218 = pneg %p144
        %p219 = pneg %p141
        %s220 = smul.u32 32, %s18
        %s221 = ssub.s32 75, %s220
        %p222 = scmp.lt.s32.totalorder %s221, 32
        %s223 = scalar_select %p222, %s221, 32
        %s224 = smul.u32 128, %s223
        %p225 = scmp.lt.s32.totalorder %s220, 74
        %s226 = scalar_select %p225, %s220, 74
        %s227 = smul.addr %s226, 8
        %s228 = scalar_lea.vmem %s0, %s227
        %s229 = smul.u32 32, %s18
        %s230 = ssub.s32 75, %s229
        %p231 = scmp.lt.s32.totalorder %s230, 32
        %s232 = scalar_select %p231, %s230, 32
        %s233 = smul.u32 128, %s232
        %p234 = scmp.eq.s32.totalorder %s18, 0
        // Predicated region
        $region41: #{tpu_custom_call.1} parent=39 // pred_check
          %p235 = pneg %p234
        $region42: #{tpu_custom_call.1} parent=39 // pred_check_branch
          %237 = sbr.rel (%p235) target = $region44
        $region43: #{tpu_custom_call.1} parent=39 // pred_region
          %vm238 = vcmask 114688
          %239 = vst.msk [vmem:[#allocation3] sm:$0x1] %vm238, 0.0
        $region44: #{tpu_custom_call.1} parent=39 // pred_fallthru
          _
        %v240 = vld [vmem:[%s228] sm:$0xff]
        %v241 = vld [vmem:[%s228 + $0x8] sm:$0xff]
        %v242 = vld [vmem:[%s228 + $0x10] sm:$0xff]
        %v243 = vld [vmem:[%s228 + $0x18] sm:$0xff]
        %v244 = vld [vmem:[%s228 + $0x20] sm:$0xff]
        %v245 = vld [vmem:[%s228 + $0x28] sm:$0xff]
        %v246 = vld [vmem:[%s228 + $0x30] sm:$0xff]
        %v247 = vld [vmem:[%s228 + $0x38] sm:$0xff]
        %v248 = vld [vmem:[%s228 + $0x40] sm:$0xff]
        %v249 = vld [vmem:[%s228 + $0x48] sm:$0xff]
        %v250 = vld [vmem:[%s228 + $0x50] sm:$0xff]
        %v251 = vld [vmem:[%s228 + $0x58] sm:$0xff]
        %v252 = vld [vmem:[%s228 + $0x60] sm:$0xff]
        %v253 = vld [vmem:[%s228 + $0x68] sm:$0xff]
        %v254 = vld [vmem:[%s228 + $0x70] sm:$0xff]
        %v255 = vld [vmem:[%s228 + $0x78] sm:$0xff]
        %v256 = vld [vmem:[%s228 + $0x80] sm:$0xff]
        %v257 = vld [vmem:[%s228 + $0x88] sm:$0xff]
        %v258 = vld [vmem:[%s228 + $0x90] sm:$0xff]
        %v259 = vld [vmem:[%s228 + $0x98] sm:$0xff]
        %v260 = vld [vmem:[%s228 + $0xa0] sm:$0xff]
        %v261 = vld [vmem:[%s228 + $0xa8] sm:$0xff]
        %v262 = vld [vmem:[%s228 + $0xb0] sm:$0xff]
        %v263 = vld [vmem:[%s228 + $0xb8] sm:$0xff]
        %v264 = vld [vmem:[%s228 + $0xc0] sm:$0xff]
        %v265 = vld [vmem:[%s228 + $0xc8] sm:$0xff]
        %v266 = vld [vmem:[%s228 + $0xd0] sm:$0xff]
        %v267 = vld [vmem:[%s228 + $0xd8] sm:$0xff]
        %v268 = vld [vmem:[%s228 + $0xe0] sm:$0xff]
        %v269 = vld [vmem:[%s228 + $0xe8] sm:$0xff]
        %v270 = vld [vmem:[%s228 + $0xf0] sm:$0xff]
        %v271 = vld [vmem:[%s228 + $0xf8] sm:$0xff]
        %v272 = vld [vmem:[%s1] sm:$0xff]
        %v273 = vld [vmem:[%s1 + $0x8] sm:$0x7f]
        %v274 = vld [vmem:[%s2] sm:$0x1]
        %v276 = vlaneseq
        %v277 = vshrl.u32 %v276, 7
        %v278 = vsub.s32 0, %v277
        %v279 = vrot.slane %v274, %v278
        %vm281 = vcmask 121856
        %v283 = vsel %vm281, %v240, 0
        %v286 = vsel %vm281, %v241, 0
        %v289 = vsel %vm281, %v242, 0
        %v292 = vsel %vm281, %v243, 0
        %v295 = vsel %vm281, %v244, 0
        %v298 = vsel %vm281, %v245, 0
        %v301 = vsel %vm281, %v246, 0
        %v304 = vsel %vm281, %v247, 0
        %v307 = vsel %vm281, %v248, 0
        %v310 = vsel %vm281, %v249, 0
        %v313 = vsel %vm281, %v250, 0
        %v316 = vsel %vm281, %v251, 0
        %v319 = vsel %vm281, %v252, 0
        %v322 = vsel %vm281, %v253, 0
        %v325 = vsel %vm281, %v254, 0
        %v328 = vsel %vm281, %v255, 0
        %v331 = vsel %vm281, %v256, 0
        %v334 = vsel %vm281, %v257, 0
        %v337 = vsel %vm281, %v258, 0
        %v340 = vsel %vm281, %v259, 0
        %v343 = vsel %vm281, %v260, 0
        %v346 = vsel %vm281, %v261, 0
        %v349 = vsel %vm281, %v262, 0
        %v352 = vsel %vm281, %v263, 0
        %v355 = vsel %vm281, %v264, 0
        %v358 = vsel %vm281, %v265, 0
        %v361 = vsel %vm281, %v266, 0
        %v364 = vsel %vm281, %v267, 0
        %v367 = vsel %vm281, %v268, 0
        %v370 = vsel %vm281, %v269, 0
        %v373 = vsel %vm281, %v270, 0
        %v376 = vsel %vm281, %v271, 0
        %vm378 = vcmask 1046528
        %v380 = vsel %vm378, %v273, 0
        %382 = vmatprep.subr.mxu0 0.0
        %383 = vmatpush1.msra.mxu0 %v272
        %384 = vmatprep.subr.mxu0 0.0
        %385 = vmatpush1.msra.mxu0 %v380
        %386 = vmatprep.subr.mxu0 0.0
        %387 = vmatpush1.msra.mxu0 0.0
        %388 = vmatprep.subr.mxu0 0.0
        %389 = vmatpush1.msra.mxu0 0.0
        %390 = vmatprep.subr.mxu0 0.0
        %391 = vmatpush1.msra.mxu0 0.0
        %392 = vmatprep.subr.mxu0 0.0
        %393 = vmatpush1.msra.mxu0 0.0
        %394 = vmatprep.subr.mxu0 0.0
        %395 = vmatpush1.msra.mxu0 0.0
        %396 = vmatprep.subr.mxu0 0.0
        %397 = vmatpush1.msra.mxu0 0.0
        %398 = vmatprep.subr.mxu0 0.0
        %399 = vmatpush1.msra.mxu0 0.0
        %400 = vmatprep.subr.mxu0 0.0
        %401 = vmatpush1.msra.mxu0 0.0
        %402 = vmatprep.subr.mxu0 0.0
        %403 = vmatpush1.msra.mxu0 0.0
        %404 = vmatprep.subr.mxu0 0.0
        %405 = vmatpush1.msra.mxu0 0.0
        %406 = vmatprep.subr.mxu0 0.0
        %407 = vmatpush1.msra.mxu0 0.0
        %408 = vmatprep.subr.mxu0 0.0
        %409 = vmatpush1.msra.mxu0 0.0
        %410 = vmatprep.subr.mxu0 0.0
        %411 = vmatpush1.msra.mxu0 0.0
        %412 = vmatprep.subr.mxu0 0.0
        %413 = vmatpush1.msra.mxu0 0.0
        %414 = vmatprep.subr.mxu0 0.0
        %415 = vmatpush1.msra.mxu0 0.0
        %416 = vmatprep.subr.mxu0 0.0
        %417 = vmatpush1.msra.mxu0 0.0
        %418 = vmatprep.subr.mxu0 0.0
        %419 = vmatpush1.msra.mxu0 0.0
        %420 = vmatprep.subr.mxu0 0.0
        %421 = vmatpush1.msra.mxu0 0.0
        %422 = vmatprep.subr.mxu0 0.0
        %423 = vmatpush1.msra.mxu0 0.0
        %424 = vmatprep.subr.mxu0 0.0
        %425 = vmatpush1.msra.mxu0 0.0
        %426 = vmatprep.subr.mxu0 0.0
        %427 = vmatpush1.msra.mxu0 0.0
        %428 = vmatprep.subr.mxu0 0.0
        %429 = vmatpush1.msra.mxu0 0.0
        %430 = vmatprep.subr.mxu0 0.0
        %431 = vmatpush1.msra.mxu0 0.0
        %432 = vmatprep.subr.mxu0 0.0
        %433 = vmatpush1.msra.mxu0 0.0
        %434 = vmatprep.subr.mxu0 0.0
        %435 = vmatpush1.msra.mxu0 0.0
        %436 = vmatprep.subr.mxu0 0.0
        %437 = vmatpush1.msra.mxu0 0.0
        %438 = vmatprep.subr.mxu0 0.0
        %439 = vmatpush1.msra.mxu0 0.0
        %440 = vmatprep.subr.mxu0 0.0
        %441 = vmatpush1.msra.mxu0 0.0
        %442 = vmatprep.subr.mxu0 0.0
        %443 = vmatpush1.msra.mxu0 0.0
        %444 = vmatprep.subr.mxu0 0.0
        %445 = vmatpush1.msra.mxu0 0.0
        %446 = vmatprep.mubr.f32.mxu0 0.0
        %447 = vmatmul.mubr.f32.gmra.mrb[0].mxu0 %v283
        %v448 = vpop.f32.mrb[0].mxu0
        %v449 = vadd.f32 %v279, %v448
        %v450 = vpop.f32.mrb[0].mxu0
        %451 = vmatprep.mubr.f32.mxu0 0.0
        %452 = vmatmul.mubr.f32.gmra.mrb[0].mxu0 %v286
        %v453 = vpop.f32.mrb[0].mxu0
        %v454 = vadd.f32 %v279, %v453
        %v455 = vpop.f32.mrb[0].mxu0
        %456 = vmatprep.mubr.f32.mxu0 0.0
        %457 = vmatmul.mubr.f32.gmra.mrb[0].mxu0 %v289
        %v458 = vpop.f32.mrb[0].mxu0
        %v459 = vadd.f32 %v279, %v458
        %v460 = vpop.f32.mrb[0].mxu0
        %461 = vmatprep.mubr.f32.mxu0 0.0
        %462 = vmatmul.mubr.f32.gmra.mrb[0].mxu0 %v292
        %v463 = vpop.f32.mrb[0].mxu0
        %v464 = vadd.f32 %v279, %v463
        %v465 = vpop.f32.mrb[0].mxu0
        %466 = vmatprep.mubr.f32.mxu0 0.0
        %467 = vmatmul.mubr.f32.gmra.mrb[0].mxu0 %v295
        %v468 = vpop.f32.mrb[0].mxu0
        %v469 = vadd.f32 %v279, %v468
        %v470 = vpop.f32.mrb[0].mxu0
        %471 = vmatprep.mubr.f32.mxu0 0.0
        %472 = vmatmul.mubr.f32.gmra.mrb[0].mxu0 %v298
        %v473 = vpop.f32.mrb[0].mxu0
        %v474 = vadd.f32 %v279, %v473
        %v475 = vpop.f32.mrb[0].mxu0
        %476 = vmatprep.mubr.f32.mxu0 0.0
        %477 = vmatmul.mubr.f32.gmra.mrb[0].mxu0 %v301
        %v478 = vpop.f32.mrb[0].mxu0
        %v479 = vadd.f32 %v279, %v478
        %v480 = vpop.f32.mrb[0].mxu0
        %481 = vmatprep.mubr.f32.mxu0 0.0
        %482 = vmatmul.mubr.f32.gmra.mrb[0].mxu0 %v304
        %v483 = vpop.f32.mrb[0].mxu0
        %v484 = vadd.f32 %v279, %v483
        %v485 = vpop.f32.mrb[0].mxu0
        %486 = vmatprep.mubr.f32.mxu0 0.0
        %487 = vmatmul.mubr.f32.gmra.mrb[0].mxu0 %v307
        %v488 = vpop.f32.mrb[0].mxu0
        %v489 = vadd.f32 %v279, %v488
        %v490 = vpop.f32.mrb[0].mxu0
        %491 = vmatprep.mubr.f32.mxu0 0.0
        %492 = vmatmul.mubr.f32.gmra.mrb[0].mxu0 %v310
        %v493 = vpop.f32.mrb[0].mxu0
        %v494 = vadd.f32 %v279, %v493
        %v495 = vpop.f32.mrb[0].mxu0
        %496 = vmatprep.mubr.f32.mxu0 0.0
        %497 = vmatmul.mubr.f32.gmra.mrb[0].mxu0 %v313
        %v498 = vpop.f32.mrb[0].mxu0
        %v499 = vadd.f32 %v279, %v498
        %v500 = vpop.f32.mrb[0].mxu0
        %501 = vmatprep.mubr.f32.mxu0 0.0
        %502 = vmatmul.mubr.f32.gmra.mrb[0].mxu0 %v316
        %v503 = vpop.f32.mrb[0].mxu0
        %v504 = vadd.f32 %v279, %v503
        %v505 = vpop.f32.mrb[0].mxu0
        %506 = vmatprep.mubr.f32.mxu0 0.0
        %507 = vmatmul.mubr.f32.gmra.mrb[0].mxu0 %v319
        %v508 = vpop.f32.mrb[0].mxu0
        %v509 = vadd.f32 %v279, %v508
        %v510 = vpop.f32.mrb[0].mxu0
        %511 = vmatprep.mubr.f32.mxu0 0.0
        %512 = vmatmul.mubr.f32.gmra.mrb[0].mxu0 %v322
        %v513 = vpop.f32.mrb[0].mxu0
        %v514 = vadd.f32 %v279, %v513
        %v515 = vpop.f32.mrb[0].mxu0
        %516 = vmatprep.mubr.f32.mxu0 0.0
        %517 = vmatmul.mubr.f32.gmra.mrb[0].mxu0 %v325
        %v518 = vpop.f32.mrb[0].mxu0
        %v519 = vadd.f32 %v279, %v518
        %v520 = vpop.f32.mrb[0].mxu0
        %521 = vmatprep.mubr.f32.mxu0 0.0
        %522 = vmatmul.mubr.f32.gmra.mrb[0].mxu0 %v328
        %v523 = vpop.f32.mrb[0].mxu0
        %v524 = vadd.f32 %v279, %v523
        %v525 = vpop.f32.mrb[0].mxu0
        %526 = vmatprep.mubr.f32.mxu0 0.0
        %527 = vmatmul.mubr.f32.gmra.mrb[0].mxu0 %v331
        %v528 = vpop.f32.mrb[0].mxu0
        %v529 = vadd.f32 %v279, %v528
        %v530 = vpop.f32.mrb[0].mxu0
        %531 = vmatprep.mubr.f32.mxu0 0.0
        %532 = vmatmul.mubr.f32.gmra.mrb[0].mxu0 %v334
        %v533 = vpop.f32.mrb[0].mxu0
        %v534 = vadd.f32 %v279, %v533
        %v535 = vpop.f32.mrb[0].mxu0
        %536 = vmatprep.mubr.f32.mxu0 0.0
        %537 = vmatmul.mubr.f32.gmra.mrb[0].mxu0 %v337
        %v538 = vpop.f32.mrb[0].mxu0
        %v539 = vadd.f32 %v279, %v538
        %v540 = vpop.f32.mrb[0].mxu0
        %541 = vmatprep.mubr.f32.mxu0 0.0
        %542 = vmatmul.mubr.f32.gmra.mrb[0].mxu0 %v340
        %v543 = vpop.f32.mrb[0].mxu0
        %v544 = vadd.f32 %v279, %v543
        %v545 = vpop.f32.mrb[0].mxu0
        %546 = vmatprep.mubr.f32.mxu0 0.0
        %547 = vmatmul.mubr.f32.gmra.mrb[0].mxu0 %v343
        %v548 = vpop.f32.mrb[0].mxu0
        %v549 = vadd.f32 %v279, %v548
        %v550 = vpop.f32.mrb[0].mxu0
        %551 = vmatprep.mubr.f32.mxu0 0.0
        %552 = vmatmul.mubr.f32.gmra.mrb[0].mxu0 %v346
        %v553 = vpop.f32.mrb[0].mxu0
        %v554 = vadd.f32 %v279, %v553
        %v555 = vpop.f32.mrb[0].mxu0
        %556 = vmatprep.mubr.f32.mxu0 0.0
        %557 = vmatmul.mubr.f32.gmra.mrb[0].mxu0 %v349
        %v558 = vpop.f32.mrb[0].mxu0
        %v559 = vadd.f32 %v279, %v558
        %v560 = vpop.f32.mrb[0].mxu0
        %561 = vmatprep.mubr.f32.mxu0 0.0
        %562 = vmatmul.mubr.f32.gmra.mrb[0].mxu0 %v352
        %v563 = vpop.f32.mrb[0].mxu0
        %v564 = vadd.f32 %v279, %v563
        %v565 = vpop.f32.mrb[0].mxu0
        %566 = vmatprep.mubr.f32.mxu0 0.0
        %567 = vmatmul.mubr.f32.gmra.mrb[0].mxu0 %v355
        %v568 = vpop.f32.mrb[0].mxu0
        %v569 = vadd.f32 %v279, %v568
        %v570 = vpop.f32.mrb[0].mxu0
        %571 = vmatprep.mubr.f32.mxu0 0.0
        %572 = vmatmul.mubr.f32.gmra.mrb[0].mxu0 %v358
        %v573 = vpop.f32.mrb[0].mxu0
        %v574 = vadd.f32 %v279, %v573
        %v575 = vpop.f32.mrb[0].mxu0
        %576 = vmatprep.mubr.f32.mxu0 0.0
        %577 = vmatmul.mubr.f32.gmra.mrb[0].mxu0 %v361
        %v578 = vpop.f32.mrb[0].mxu0
        %v579 = vadd.f32 %v279, %v578
        %v580 = vpop.f32.mrb[0].mxu0
        %581 = vmatprep.mubr.f32.mxu0 0.0
        %582 = vmatmul.mubr.f32.gmra.mrb[0].mxu0 %v364
        %v583 = vpop.f32.mrb[0].mxu0
        %v584 = vadd.f32 %v279, %v583
        %v585 = vpop.f32.mrb[0].mxu0
        %586 = vmatprep.mubr.f32.mxu0 0.0
        %587 = vmatmul.mubr.f32.gmra.mrb[0].mxu0 %v367
        %v588 = vpop.f32.mrb[0].mxu0
        %v589 = vadd.f32 %v279, %v588
        %v590 = vpop.f32.mrb[0].mxu0
        %591 = vmatprep.mubr.f32.mxu0 0.0
        %592 = vmatmul.mubr.f32.gmra.mrb[0].mxu0 %v370
        %v593 = vpop.f32.mrb[0].mxu0
        %v594 = vadd.f32 %v279, %v593
        %v595 = vpop.f32.mrb[0].mxu0
        %596 = vmatprep.mubr.f32.mxu0 0.0
        %597 = vmatmul.mubr.f32.gmra.mrb[0].mxu0 %v373
        %v598 = vpop.f32.mrb[0].mxu0
        %v599 = vadd.f32 %v279, %v598
        %v600 = vpop.f32.mrb[0].mxu0
        %601 = vmatprep.mubr.f32.mxu0 0.0
        %602 = vmatmul.mubr.f32.gmra.mrb[0].mxu0 %v376
        %v603 = vpop.f32.mrb[0].mxu0
        %v604 = vadd.f32 %v279, %v603
        %v605 = vpop.f32.mrb[0].mxu0
        %606 = vdwg.mxu0
        %v607 = vtanh.pop %v449
        %v608 = vtanh.pop %v454
        %v609 = vtanh.pop %v459
        %v610 = vtanh.pop %v464
        %v611 = vtanh.pop %v469
        %v612 = vtanh.pop %v474
        %v613 = vtanh.pop %v479
        %v614 = vtanh.pop %v484
        %v615 = vtanh.pop %v489
        %v616 = vtanh.pop %v494
        %v617 = vtanh.pop %v499
        %v618 = vtanh.pop %v504
        %v619 = vtanh.pop %v509
        %v620 = vtanh.pop %v514
        %v621 = vtanh.pop %v519
        %v622 = vtanh.pop %v524
        %v623 = vtanh.pop %v529
        %v624 = vtanh.pop %v534
        %v625 = vtanh.pop %v539
        %v626 = vtanh.pop %v544
        %v627 = vtanh.pop %v549
        %v628 = vtanh.pop %v554
        %v629 = vtanh.pop %v559
        %v630 = vtanh.pop %v564
        %v631 = vtanh.pop %v569
        %v632 = vtanh.pop %v574
        %v633 = vtanh.pop %v579
        %v634 = vtanh.pop %v584
        %v635 = vtanh.pop %v589
        %v636 = vtanh.pop %v594
        %v637 = vtanh.pop %v599
        %v638 = vtanh.pop %v604
        %v639 = vld [vmem:[%s3] sm:$0x1]
        %v641 = vlaneseq
        %v642 = vshrl.u32 %v641, 7
        %v643 = vsub.s32 0, %v642
        %v644 = vrot.slane %v639, %v643
        %v646 = vmul.f32 %v607, %v644
        %v647 = vmul.f32 %v608, %v644
        %v648 = vmul.f32 %v609, %v644
        %v649 = vmul.f32 %v610, %v644
        %v650 = vmul.f32 %v611, %v644
        %v651 = vmul.f32 %v612, %v644
        %v652 = vmul.f32 %v613, %v644
        %v653 = vmul.f32 %v614, %v644
        %v654 = vmul.f32 %v615, %v644
        %v655 = vmul.f32 %v616, %v644
        %v656 = vmul.f32 %v617, %v644
        %v657 = vmul.f32 %v618, %v644
        %v658 = vmul.f32 %v619, %v644
        %v659 = vmul.f32 %v620, %v644
        %v660 = vmul.f32 %v621, %v644
        %v661 = vmul.f32 %v622, %v644
        %v662 = vmul.f32 %v623, %v644
        %v663 = vmul.f32 %v624, %v644
        %v664 = vmul.f32 %v625, %v644
        %v665 = vmul.f32 %v626, %v644
        %v666 = vmul.f32 %v627, %v644
        %v667 = vmul.f32 %v628, %v644
        %v668 = vmul.f32 %v629, %v644
        %v669 = vmul.f32 %v630, %v644
        %v670 = vmul.f32 %v631, %v644
        %v671 = vmul.f32 %v632, %v644
        %v672 = vmul.f32 %v633, %v644
        %v673 = vmul.f32 %v634, %v644
        %v674 = vmul.f32 %v635, %v644
        %v675 = vmul.f32 %v636, %v644
        %v676 = vmul.f32 %v637, %v644
        %v677 = vmul.f32 %v638, %v644
        %v678 = vsel %vm281, %v646, 0.0
        %679 = vadd.xlane.f32.xlu0 %v678
        %v680 = vpop.xlane.xlu0 %679
        %v681 = vsel %vm281, %v647, 0.0
        %682 = vadd.xlane.f32.xlu0 %v681
        %v683 = vpop.xlane.xlu0 %682
        %v684 = vsel %vm281, %v648, 0.0
        %685 = vadd.xlane.f32.xlu0 %v684
        %v686 = vpop.xlane.xlu0 %685
        %v687 = vsel %vm281, %v649, 0.0
        %688 = vadd.xlane.f32.xlu0 %v687
        %v689 = vpop.xlane.xlu0 %688
        %v690 = vsel %vm281, %v650, 0.0
        %691 = vadd.xlane.f32.xlu0 %v690
        %v692 = vpop.xlane.xlu0 %691
        %v693 = vsel %vm281, %v651, 0.0
        %694 = vadd.xlane.f32.xlu0 %v693
        %v695 = vpop.xlane.xlu0 %694
        %v696 = vsel %vm281, %v652, 0.0
        %697 = vadd.xlane.f32.xlu0 %v696
        %v698 = vpop.xlane.xlu0 %697
        %v699 = vsel %vm281, %v653, 0.0
        %700 = vadd.xlane.f32.xlu0 %v699
        %v701 = vpop.xlane.xlu0 %700
        %v702 = vsel %vm281, %v654, 0.0
        %703 = vadd.xlane.f32.xlu0 %v702
        %v704 = vpop.xlane.xlu0 %703
        %v705 = vsel %vm281, %v655, 0.0
        %706 = vadd.xlane.f32.xlu0 %v705
        %v707 = vpop.xlane.xlu0 %706
        %v708 = vsel %vm281, %v656, 0.0
        %709 = vadd.xlane.f32.xlu0 %v708
        %v710 = vpop.xlane.xlu0 %709
        %v711 = vsel %vm281, %v657, 0.0
        %712 = vadd.xlane.f32.xlu0 %v711
        %v713 = vpop.xlane.xlu0 %712
        %v714 = vsel %vm281, %v658, 0.0
        %715 = vadd.xlane.f32.xlu0 %v714
        %v716 = vpop.xlane.xlu0 %715
        %v717 = vsel %vm281, %v659, 0.0
        %718 = vadd.xlane.f32.xlu0 %v717
        %v719 = vpop.xlane.xlu0 %718
        %v720 = vsel %vm281, %v660, 0.0
        %721 = vadd.xlane.f32.xlu0 %v720
        %v722 = vpop.xlane.xlu0 %721
        %v723 = vsel %vm281, %v661, 0.0
        %724 = vadd.xlane.f32.xlu0 %v723
        %v725 = vpop.xlane.xlu0 %724
        %v726 = vsel %vm281, %v662, 0.0
        %727 = vadd.xlane.f32.xlu0 %v726
        %v728 = vpop.xlane.xlu0 %727
        %v729 = vsel %vm281, %v663, 0.0
        %730 = vadd.xlane.f32.xlu0 %v729
        %v731 = vpop.xlane.xlu0 %730
        %v732 = vsel %vm281, %v664, 0.0
        %733 = vadd.xlane.f32.xlu0 %v732
        %v734 = vpop.xlane.xlu0 %733
        %v735 = vsel %vm281, %v665, 0.0
        %736 = vadd.xlane.f32.xlu0 %v735
        %v737 = vpop.xlane.xlu0 %736
        %v738 = vsel %vm281, %v666, 0.0
        %739 = vadd.xlane.f32.xlu0 %v738
        %v740 = vpop.xlane.xlu0 %739
        %v741 = vsel %vm281, %v667, 0.0
        %742 = vadd.xlane.f32.xlu0 %v741
        %v743 = vpop.xlane.xlu0 %742
        %v744 = vsel %vm281, %v668, 0.0
        %745 = vadd.xlane.f32.xlu0 %v744
        %v746 = vpop.xlane.xlu0 %745
        %v747 = vsel %vm281, %v669, 0.0
        %748 = vadd.xlane.f32.xlu0 %v747
        %v749 = vpop.xlane.xlu0 %748
        %v750 = vsel %vm281, %v670, 0.0
        %751 = vadd.xlane.f32.xlu0 %v750
        %v752 = vpop.xlane.xlu0 %751
        %v753 = vsel %vm281, %v671, 0.0
        %754 = vadd.xlane.f32.xlu0 %v753
        %v755 = vpop.xlane.xlu0 %754
        %v756 = vsel %vm281, %v672, 0.0
        %757 = vadd.xlane.f32.xlu0 %v756
        %v758 = vpop.xlane.xlu0 %757
        %v759 = vsel %vm281, %v673, 0.0
        %760 = vadd.xlane.f32.xlu0 %v759
        %v761 = vpop.xlane.xlu0 %760
        %v762 = vsel %vm281, %v674, 0.0
        %763 = vadd.xlane.f32.xlu0 %v762
        %v764 = vpop.xlane.xlu0 %763
        %v765 = vsel %vm281, %v675, 0.0
        %766 = vadd.xlane.f32.xlu0 %v765
        %v767 = vpop.xlane.xlu0 %766
        %v768 = vsel %vm281, %v676, 0.0
        %769 = vadd.xlane.f32.xlu0 %v768
        %v770 = vpop.xlane.xlu0 %769
        %v771 = vsel %vm281, %v677, 0.0
        %772 = vadd.xlane.f32.xlu0 %v771
        %v773 = vpop.xlane.xlu0 %772
        %s774 = sld [smem:[#allocation2]]
        %v775 = vstv %s774
        %v776 = vadd.f32 %v680, %v775
        %v777 = vadd.f32 %v683, %v775
        %v778 = vadd.f32 %v686, %v775
        %v779 = vadd.f32 %v689, %v775
        %v780 = vadd.f32 %v692, %v775
        %v781 = vadd.f32 %v695, %v775
        %v782 = vadd.f32 %v698, %v775
        %v783 = vadd.f32 %v701, %v775
        %v784 = vadd.f32 %v704, %v775
        %v785 = vadd.f32 %v707, %v775
        %v786 = vadd.f32 %v710, %v775
        %v787 = vadd.f32 %v713, %v775
        %v788 = vadd.f32 %v716, %v775
        %v789 = vadd.f32 %v719, %v775
        %v790 = vadd.f32 %v722, %v775
        %v791 = vadd.f32 %v725, %v775
        %v792 = vadd.f32 %v728, %v775
        %v793 = vadd.f32 %v731, %v775
        %v794 = vadd.f32 %v734, %v775
        %v795 = vadd.f32 %v737, %v775
        %v796 = vadd.f32 %v740, %v775
        %v797 = vadd.f32 %v743, %v775
        %v798 = vadd.f32 %v746, %v775
        %v799 = vadd.f32 %v749, %v775
        %v800 = vadd.f32 %v752, %v775
        %v801 = vadd.f32 %v755, %v775
        %v802 = vadd.f32 %v758, %v775
        %v803 = vadd.f32 %v761, %v775
        %v804 = vadd.f32 %v764, %v775
        %v805 = vadd.f32 %v767, %v775
        %v806 = vadd.f32 %v770, %v775
        %v807 = vadd.f32 %v773, %v775
        %v808 = vmul.f32 %v240, %v776
        %v809 = vmul.f32 %v241, %v777
        %v810 = vmul.f32 %v242, %v778
        %v811 = vmul.f32 %v243, %v779
        %v812 = vmul.f32 %v244, %v780
        %v813 = vmul.f32 %v245, %v781
        %v814 = vmul.f32 %v246, %v782
        %v815 = vmul.f32 %v247, %v783
        %v816 = vmul.f32 %v248, %v784
        %v817 = vmul.f32 %v249, %v785
        %v818 = vmul.f32 %v250, %v786
        %v819 = vmul.f32 %v251, %v787
        %v820 = vmul.f32 %v252, %v788
        %v821 = vmul.f32 %v253, %v789
        %v822 = vmul.f32 %v254, %v790
        %v823 = vmul.f32 %v255, %v791
        %v824 = vmul.f32 %v256, %v792
        %v825 = vmul.f32 %v257, %v793
        %v826 = vmul.f32 %v258, %v794
        %v827 = vmul.f32 %v259, %v795
        %v828 = vmul.f32 %v260, %v796
        %v829 = vmul.f32 %v261, %v797
        %v830 = vmul.f32 %v262, %v798
        %v831 = vmul.f32 %v263, %v799
        %v832 = vmul.f32 %v264, %v800
        %v833 = vmul.f32 %v265, %v801
        %v834 = vmul.f32 %v266, %v802
        %v835 = vmul.f32 %v267, %v803
        %v836 = vmul.f32 %v268, %v804
        %v837 = vmul.f32 %v269, %v805
        %v838 = vmul.f32 %v270, %v806
        %v839 = vmul.f32 %v271, %v807
        %v840 = vlaneseq
        %v841 = vshrl.u32 %v840, 7
        %v842 = vadd.s32 %v841, 8
        %v843 = vadd.s32 %v841, 16
        %v844 = vadd.s32 %v841, 24
        %v845 = vadd.s32 %v841, 32
        %v846 = vadd.s32 %v841, 40
        %v847 = vadd.s32 %v841, 48
        %v848 = vadd.s32 %v841, 56
        %v849 = vadd.s32 %v841, 64
        %v850 = vadd.s32 %v841, 72
        %v851 = vadd.s32 %v841, 80
        %v852 = vadd.s32 %v841, 88
        %v853 = vadd.s32 %v841, 96
        %v854 = vadd.s32 %v841, 104
        %v855 = vadd.s32 %v841, 112
        %v856 = vadd.s32 %v841, 120
        %v857 = vadd.s32 %v841, 128
        %v858 = vadd.s32 %v841, 136
        %v859 = vadd.s32 %v841, 144
        %v860 = vadd.s32 %v841, 152
        %v861 = vadd.s32 %v841, 160
        %v862 = vadd.s32 %v841, 168
        %v863 = vadd.s32 %v841, 176
        %v864 = vadd.s32 %v841, 184
        %v865 = vadd.s32 %v841, 192
        %v866 = vadd.s32 %v841, 200
        %v867 = vadd.s32 %v841, 208
        %v868 = vadd.s32 %v841, 216
        %v869 = vadd.s32 %v841, 224
        %v870 = vadd.s32 %v841, 232
        %v871 = vadd.s32 %v841, 240
        %v872 = vadd.s32 %v841, 248
        %s873 = smul.u32 %s18, 256
        %v874 = vstv %s873
        %v875 = vadd.s32 %v841, %v874
        %v876 = vadd.s32 %v842, %v874
        %v877 = vadd.s32 %v843, %v874
        %v878 = vadd.s32 %v844, %v874
        %v879 = vadd.s32 %v845, %v874
        %v880 = vadd.s32 %v846, %v874
        %v881 = vadd.s32 %v847, %v874
        %v882 = vadd.s32 %v848, %v874
        %v883 = vadd.s32 %v849, %v874
        %v884 = vadd.s32 %v850, %v874
        %v885 = vadd.s32 %v851, %v874
        %v886 = vadd.s32 %v852, %v874
        %v887 = vadd.s32 %v853, %v874
        %v888 = vadd.s32 %v854, %v874
        %v889 = vadd.s32 %v855, %v874
        %v890 = vadd.s32 %v856, %v874
        %v891 = vadd.s32 %v857, %v874
        %v892 = vadd.s32 %v858, %v874
        %v893 = vadd.s32 %v859, %v874
        %v894 = vadd.s32 %v860, %v874
        %v895 = vadd.s32 %v861, %v874
        %v896 = vadd.s32 %v862, %v874
        %v897 = vadd.s32 %v863, %v874
        %v898 = vadd.s32 %v864, %v874
        %v899 = vadd.s32 %v865, %v874
        %v900 = vadd.s32 %v866, %v874
        %v901 = vadd.s32 %v867, %v874
        %v902 = vadd.s32 %v868, %v874
        %v903 = vadd.s32 %v869, %v874
        %v904 = vadd.s32 %v870, %v874
        %v905 = vadd.s32 %v871, %v874
        %v906 = vadd.s32 %v872, %v874
        %vm907 = vcmp.lt.s32.totalorder %v875, 600
        %vm908 = vcmp.lt.s32.totalorder %v876, 600
        %vm909 = vcmp.lt.s32.totalorder %v877, 600
        %vm910 = vcmp.lt.s32.totalorder %v878, 600
        %vm911 = vcmp.lt.s32.totalorder %v879, 600
        %vm912 = vcmp.lt.s32.totalorder %v880, 600
        %vm913 = vcmp.lt.s32.totalorder %v881, 600
        %vm914 = vcmp.lt.s32.totalorder %v882, 600
        %vm915 = vcmp.lt.s32.totalorder %v883, 600
        %vm916 = vcmp.lt.s32.totalorder %v884, 600
        %vm917 = vcmp.lt.s32.totalorder %v885, 600
        %vm918 = vcmp.lt.s32.totalorder %v886, 600
        %vm919 = vcmp.lt.s32.totalorder %v887, 600
        %vm920 = vcmp.lt.s32.totalorder %v888, 600
        %vm921 = vcmp.lt.s32.totalorder %v889, 600
        %vm922 = vcmp.lt.s32.totalorder %v890, 600
        %vm923 = vcmp.lt.s32.totalorder %v891, 600
        %vm924 = vcmp.lt.s32.totalorder %v892, 600
        %vm925 = vcmp.lt.s32.totalorder %v893, 600
        %vm926 = vcmp.lt.s32.totalorder %v894, 600
        %vm927 = vcmp.lt.s32.totalorder %v895, 600
        %vm928 = vcmp.lt.s32.totalorder %v896, 600
        %vm929 = vcmp.lt.s32.totalorder %v897, 600
        %vm930 = vcmp.lt.s32.totalorder %v898, 600
        %vm931 = vcmp.lt.s32.totalorder %v899, 600
        %vm932 = vcmp.lt.s32.totalorder %v900, 600
        %vm933 = vcmp.lt.s32.totalorder %v901, 600
        %vm934 = vcmp.lt.s32.totalorder %v902, 600
        %vm935 = vcmp.lt.s32.totalorder %v903, 600
        %vm936 = vcmp.lt.s32.totalorder %v904, 600
        %vm937 = vcmp.lt.s32.totalorder %v905, 600
        %vm938 = vcmp.lt.s32.totalorder %v906, 600
        %v939 = vsel %vm907, 1, 0
        %v940 = vsel %vm908, 1, 0
        %v941 = vsel %vm909, 1, 0
        %v942 = vsel %vm910, 1, 0
        %v943 = vsel %vm911, 1, 0
        %v944 = vsel %vm912, 1, 0
        %v945 = vsel %vm913, 1, 0
        %v946 = vsel %vm914, 1, 0
        %v947 = vsel %vm915, 1, 0
        %v948 = vsel %vm916, 1, 0
        %v949 = vsel %vm917, 1, 0
        %v950 = vsel %vm918, 1, 0
        %v951 = vsel %vm919, 1, 0
        %v952 = vsel %vm920, 1, 0
        %v953 = vsel %vm921, 1, 0
        %v954 = vsel %vm922, 1, 0
        %v955 = vsel %vm923, 1, 0
        %v956 = vsel %vm924, 1, 0
        %v957 = vsel %vm925, 1, 0
        %v958 = vsel %vm926, 1, 0
        %v959 = vsel %vm927, 1, 0
        %v960 = vsel %vm928, 1, 0
        %v961 = vsel %vm929, 1, 0
        %v962 = vsel %vm930, 1, 0
        %v963 = vsel %vm931, 1, 0
        %v964 = vsel %vm932, 1, 0
        %v965 = vsel %vm933, 1, 0
        %v966 = vsel %vm934, 1, 0
        %v967 = vsel %vm935, 1, 0
        %v968 = vsel %vm936, 1, 0
        %v969 = vsel %vm937, 1, 0
        %v970 = vsel %vm938, 1, 0
        %vm971 = vcmp.eq.s32.totalorder %v939, 1
        %vm972 = vcmp.eq.s32.totalorder %v940, 1
        %vm973 = vcmp.eq.s32.totalorder %v941, 1
        %vm974 = vcmp.eq.s32.totalorder %v942, 1
        %vm975 = vcmp.eq.s32.totalorder %v943, 1
        %vm976 = vcmp.eq.s32.totalorder %v944, 1
        %vm977 = vcmp.eq.s32.totalorder %v945, 1
        %vm978 = vcmp.eq.s32.totalorder %v946, 1
        %vm979 = vcmp.eq.s32.totalorder %v947, 1
        %vm980 = vcmp.eq.s32.totalorder %v948, 1
        %vm981 = vcmp.eq.s32.totalorder %v949, 1
        %vm982 = vcmp.eq.s32.totalorder %v950, 1
        %vm983 = vcmp.eq.s32.totalorder %v951, 1
        %vm984 = vcmp.eq.s32.totalorder %v952, 1
        %vm985 = vcmp.eq.s32.totalorder %v953, 1
        %vm986 = vcmp.eq.s32.totalorder %v954, 1
        %vm987 = vcmp.eq.s32.totalorder %v955, 1
        %vm988 = vcmp.eq.s32.totalorder %v956, 1
        %vm989 = vcmp.eq.s32.totalorder %v957, 1
        %vm990 = vcmp.eq.s32.totalorder %v958, 1
        %vm991 = vcmp.eq.s32.totalorder %v959, 1
        %vm992 = vcmp.eq.s32.totalorder %v960, 1
        %vm993 = vcmp.eq.s32.totalorder %v961, 1
        %vm994 = vcmp.eq.s32.totalorder %v962, 1
        %vm995 = vcmp.eq.s32.totalorder %v963, 1
        %vm996 = vcmp.eq.s32.totalorder %v964, 1
        %vm997 = vcmp.eq.s32.totalorder %v965, 1
        %vm998 = vcmp.eq.s32.totalorder %v966, 1
        %vm999 = vcmp.eq.s32.totalorder %v967, 1
        %vm1000 = vcmp.eq.s32.totalorder %v968, 1
        %vm1001 = vcmp.eq.s32.totalorder %v969, 1
        %vm1002 = vcmp.eq.s32.totalorder %v970, 1
        %v1003 = vsel %vm971, %v808, 0.0
        %v1004 = vsel %vm972, %v809, 0.0
        %v1005 = vsel %vm973, %v810, 0.0
        %v1006 = vsel %vm974, %v811, 0.0
        %v1007 = vsel %vm975, %v812, 0.0
        %v1008 = vsel %vm976, %v813, 0.0
        %v1009 = vsel %vm977, %v814, 0.0
        %v1010 = vsel %vm978, %v815, 0.0
        %v1011 = vsel %vm979, %v816, 0.0
        %v1012 = vsel %vm980, %v817, 0.0
        %v1013 = vsel %vm981, %v818, 0.0
        %v1014 = vsel %vm982, %v819, 0.0
        %v1015 = vsel %vm983, %v820, 0.0
        %v1016 = vsel %vm984, %v821, 0.0
        %v1017 = vsel %vm985, %v822, 0.0
        %v1018 = vsel %vm986, %v823, 0.0
        %v1019 = vsel %vm987, %v824, 0.0
        %v1020 = vsel %vm988, %v825, 0.0
        %v1021 = vsel %vm989, %v826, 0.0
        %v1022 = vsel %vm990, %v827, 0.0
        %v1023 = vsel %vm991, %v828, 0.0
        %v1024 = vsel %vm992, %v829, 0.0
        %v1025 = vsel %vm993, %v830, 0.0
        %v1026 = vsel %vm994, %v831, 0.0
        %v1027 = vsel %vm995, %v832, 0.0
        %v1028 = vsel %vm996, %v833, 0.0
        %v1029 = vsel %vm997, %v834, 0.0
        %v1030 = vsel %vm998, %v835, 0.0
        %v1031 = vsel %vm999, %v836, 0.0
        %v1032 = vsel %vm1000, %v837, 0.0
        %v1033 = vsel %vm1001, %v838, 0.0
        %v1034 = vsel %vm1002, %v839, 0.0
        %v1035 = vld [vmem:[#allocation3] sm:$0x1]
        %v1036 = vsel %vm281, %v1003, 0.0
        %v1037 = vsel %vm281, %v1004, 0.0
        %v1038 = vadd.f32 %v1036, %v1037
        %v1039 = vsel %vm281, %v1005, 0.0
        %v1040 = vadd.f32 %v1038, %v1039
        %v1041 = vsel %vm281, %v1006, 0.0
        %v1042 = vadd.f32 %v1040, %v1041
        %v1043 = vsel %vm281, %v1007, 0.0
        %v1044 = vadd.f32 %v1042, %v1043
        %v1045 = vsel %vm281, %v1008, 0.0
        %v1046 = vadd.f32 %v1044, %v1045
        %v1047 = vsel %vm281, %v1009, 0.0
        %v1048 = vadd.f32 %v1046, %v1047
        %v1049 = vsel %vm281, %v1010, 0.0
        %v1050 = vadd.f32 %v1048, %v1049
        %v1051 = vsel %vm281, %v1011, 0.0
        %v1052 = vadd.f32 %v1050, %v1051
        %v1053 = vsel %vm281, %v1012, 0.0
        %v1054 = vadd.f32 %v1052, %v1053
        %v1055 = vsel %vm281, %v1013, 0.0
        %v1056 = vadd.f32 %v1054, %v1055
        %v1057 = vsel %vm281, %v1014, 0.0
        %v1058 = vadd.f32 %v1056, %v1057
        %v1059 = vsel %vm281, %v1015, 0.0
        %v1060 = vadd.f32 %v1058, %v1059
        %v1061 = vsel %vm281, %v1016, 0.0
        %v1062 = vadd.f32 %v1060, %v1061
        %v1063 = vsel %vm281, %v1017, 0.0
        %v1064 = vadd.f32 %v1062, %v1063
        %v1065 = vsel %vm281, %v1018, 0.0
        %v1066 = vadd.f32 %v1064, %v1065
        %v1067 = vsel %vm281, %v1019, 0.0
        %v1068 = vadd.f32 %v1066, %v1067
        %v1069 = vsel %vm281, %v1020, 0.0
        %v1070 = vadd.f32 %v1068, %v1069
        %v1071 = vsel %vm281, %v1021, 0.0
        %v1072 = vadd.f32 %v1070, %v1071
        %v1073 = vsel %vm281, %v1022, 0.0
        %v1074 = vadd.f32 %v1072, %v1073
        %v1075 = vsel %vm281, %v1023, 0.0
        %v1076 = vadd.f32 %v1074, %v1075
        %v1077 = vsel %vm281, %v1024, 0.0
        %v1078 = vadd.f32 %v1076, %v1077
        %v1079 = vsel %vm281, %v1025, 0.0
        %v1080 = vadd.f32 %v1078, %v1079
        %v1081 = vsel %vm281, %v1026, 0.0
        %v1082 = vadd.f32 %v1080, %v1081
        %v1083 = vsel %vm281, %v1027, 0.0
        %v1084 = vadd.f32 %v1082, %v1083
        %v1085 = vsel %vm281, %v1028, 0.0
        %v1086 = vadd.f32 %v1084, %v1085
        %v1087 = vsel %vm281, %v1029, 0.0
        %v1088 = vadd.f32 %v1086, %v1087
        %v1089 = vsel %vm281, %v1030, 0.0
        %v1090 = vadd.f32 %v1088, %v1089
        %v1091 = vsel %vm281, %v1031, 0.0
        %v1092 = vadd.f32 %v1090, %v1091
        %v1093 = vsel %vm281, %v1032, 0.0
        %v1094 = vadd.f32 %v1092, %v1093
        %v1095 = vsel %vm281, %v1033, 0.0
        %v1096 = vadd.f32 %v1094, %v1095
        %v1097 = vsel %vm281, %v1034, 0.0
        %v1098 = vadd.f32 %v1096, %v1097
        %v1099 = vrot.slane %v1098, 4
        %v1100 = vadd.f32 %v1098, %v1099
        %v1101 = vrot.slane %v1100, 2
        %v1102 = vadd.f32 %v1100, %v1101
        %v1103 = vrot.slane %v1102, 1
        %v1104 = vadd.f32 %v1102, %v1103
        %v1105 = vadd.f32 %v1035, %v1104
        %vm1106 = vcmask 114688
        %1107 = vst.msk [vmem:[#allocation3] sm:$0x1] %vm1106, %v1105
        %p1108 = scmp.eq.s32.totalorder %s18, 2
        // Predicated region
        $region45: #{tpu_custom_call.1} parent=39 // pred_check
          %p1109 = pneg %p1108
        $region46: #{tpu_custom_call.1} parent=39 // pred_check_branch
          %1111 = sbr.rel (%p1109) target = $region48
        $region47: #{tpu_custom_call.1} parent=39 // pred_region
          %v1112 = vld [vmem:[#allocation3] sm:$0x1]
          %v1113 = vmul.f32 %v1112, 0.0016666667
          %1114 = vst.msk [vmem:[#allocation3] sm:$0x1] %vm1106, %v1113
        $region48: #{tpu_custom_call.1} parent=39 // pred_fallthru
          _
        // Predicated region
        $region49: #{tpu_custom_call.1} parent=39 // pred_check
          %p1115 = pneg %p141
        $region50: #{tpu_custom_call.1} parent=39 // pred_check_branch
          %1117 = sbr.rel (%p1115) target = $region52
        $region51: #{tpu_custom_call.1} parent=39 // pred_region
          %s1119 = ssub.s32 16, 16
          %1120 = vsyncadd [#allocation4], %s1119
          %s1122 = sshll.u32 [#allocation3], 4
          %s1123 = int_to_ptr.vmem [resolvable:$true] %s1122
          %1125 = dma.vmem_to_hbm [thread:$0]  %s1123, 16, %s5, [#allocation4]
        $region52: #{tpu_custom_call.1} parent=39 // pred_fallthru
          _
        // Predicated region
        $region53: #{tpu_custom_call.1} parent=39 // pred_check
          %p1126 = pneg %p141
        $region54: #{tpu_custom_call.1} parent=39 // pred_check_branch
          %1128 = sbr.rel (%p1126) target = $region56
        $region55: #{tpu_custom_call.1} parent=39 // pred_region
          %1129 = dma.done [#allocation4], 16
        $region56: #{tpu_custom_call.1} parent=39 // pred_fallthru
          _
      $region40: #{tpu_custom_call.1} parent=5 // pred_fallthru
        _
      %p1130 = scmp.le.s32.totalorder 2, %s13
      // Predicated region
      $region57: #{tpu_custom_call.1} parent=5 // pred_check
        %p1131 = pneg %p1130
      $region58: #{tpu_custom_call.1} parent=5 // pred_check_branch
        %1133 = sbr.rel (%p1131) target = $region60
      $region59: #{tpu_custom_call.1} parent=5 // pred_region
        %s1134 = ssub.s32 %s13, 2
      $region60: #{tpu_custom_call.1} parent=5 // pred_fallthru
        _
    $region6: #{tpu_custom_call.1} parent=1 // loop_footer
      %s17 = sadd.s32 1, %s13
    $region7: #{tpu_custom_call.1} parent=1 // loop_footer_branch
      %12 = sbr.rel target = $region3
    $region8: #{tpu_custom_call.1} parent=1 // loop_exit
      _
    %1135 = vsyncpa [#allocation4], 1
    %s1136 = scalar_lea.sflag [#allocation4], 1
    %1137 = vsyncpa %s1136, 1

</llo_original>
